<compile_context>
chip_gen: v5e
topology: v5e:2x2
jax: 0.10.0
libtpu: 0.0.40
codegen_flags: <defaults>
</compile_context>

<pallas_src>
import functools

import jax
import jax.numpy as jnp
import numpy as np
from jax.experimental import pallas as pl
from jax.experimental.pallas import tpu as pltpu


def _gvq_kernel(x_ref, w_ref, b_ref, cb_ref, out_ref, hardp_ref, softp_ref,
                hard_sc, *, groups, v_pad, inner_tiles, n_valid, has_tail):
    """One grid step: block_n rows of the flattened activations.

    Grid: (num_partitions [parallel], inner_tiles [arbitrary]).

    x_ref:    (TN, C)                 activations tile (matmul_dtype)
    w_ref:    (C, G*Vp)               projection weight (resident)
    b_ref:    (1, G*Vp)               projection bias, f32 (-1e9 in pad lanes)
    cb_ref:   (G*Vp, vqd_pad)         block-diagonal codebook (resident)
    out_ref:  (TN, vqd_pad)           quantized output tile, f32
    hardp_ref:(8, G*Vp)               per-partition one-hot counts (row 0 used)
    softp_ref:(8, G*Vp)               per-partition softmax sums   (row 0 used)
    hard_sc:  (TN, G*Vp) VMEM scratch per-group one-hots (matmul_dtype)
    """
    i = pl.program_id(1)
    tn = x_ref.shape[0]

    @pl.when(i == 0)
    def _init():
        hardp_ref[...] = jnp.zeros_like(hardp_ref)
        softp_ref[...] = jnp.zeros_like(softp_ref)

    # weight_proj: Linear(dim, groups*num_vars); f32 accumulation on the MXU.
    logits = jnp.dot(x_ref[...], w_ref[...],
                     preferred_element_type=jnp.float32) + b_ref[...]  # (TN, GVp)

    # Row-validity vector (1, TN): only materialized when a padded tail exists.
    if has_tail:
        gtile = pl.program_id(0) * inner_tiles + i
        rows = gtile * tn + jax.lax.broadcasted_iota(jnp.int32, (1, tn), 1)
        valid = (rows < n_valid).astype(jnp.float32)
    else:
        valid = jnp.ones((1, tn), jnp.float32)

    # Hoisted: same iota for every group.
    col_iota = jax.lax.broadcasted_iota(jnp.int32, (tn, v_pad), 1)

    for g in range(groups):
        lo = g * v_pad
        lg = logits[:, lo:lo + v_pad]                            # (TN, Vp) f32
        mx = jnp.max(lg, axis=-1, keepdims=True)
        # first index attaining the max (matches torch scatter-of-argmax)
        first_max = jnp.min(jnp.where(lg == mx, col_iota, v_pad),
                            axis=-1, keepdims=True)
        hard_sc[:, lo:lo + v_pad] = (col_iota == first_max).astype(hard_sc.dtype)

        # numerically stable softmax; pad lanes (logit -1e9) underflow to 0
        e = jnp.exp(lg - mx)
        p = e * pl.reciprocal(jnp.sum(e, axis=-1, keepdims=True), approx=False)

        # soft statistics: MXU reduction over rows, tail mask folded in
        softp_ref[0:1, lo:lo + v_pad] += jnp.dot(
            valid, p, preferred_element_type=jnp.float32)

    # hard statistics: one MXU matmul reduces all rows, folds mask + dtype cast
    hardp_ref[0:1, :] += jnp.dot(valid.astype(hard_sc.dtype), hard_sc[...],
                                 preferred_element_type=jnp.float32)

    # single fused MXU matmul against the block-diagonal codebook
    out_ref[...] = jnp.dot(hard_sc[...], cb_ref[...],
                           preferred_element_type=jnp.float32
                           ).astype(out_ref.dtype)


def gumbel_vq_forward(x, w, b, codebook, *, groups, num_vars, vq_dim,
                      time_first=True, combine_groups=False, curr_temp=2.0,
                      block_n=1024, num_partitions=2,
                      matmul_dtype=jnp.bfloat16):
    """Eval-mode forward of fairseq GumbelVectorQuantizer.

    x: (B, T, C) if time_first else (B, C, T)
    w: (C, groups*num_vars)   -- transposed nn.Linear weight
    b: (groups*num_vars,) or (1, groups*num_vars)
    codebook: (num_groups*num_vars, vq_dim // groups)
    block_n: rows of B*T processed per grid step.
    num_partitions: leading "parallel" grid axis (2 maps to the two v7x TCs;
                    harmless serial split elsewhere).
    matmul_dtype: jnp.bfloat16 (recommended on v5e/v6e/v7x) or jnp.float32
                  (bit-exact vs. the f32 reference).
    """
    if not time_first:
        x = jnp.swapaxes(x, 1, 2)
    bsz, tsz, fsz = x.shape
    assert vq_dim % groups == 0
    var_dim = vq_dim // groups
    n = bsz * tsz

    # --- lane padding (everything in-kernel becomes 128-aligned) -----------
    v_pad = ((num_vars + 127) // 128) * 128
    gv_pad = groups * v_pad
    vqd_pad = ((vq_dim + 127) // 128) * 128

    # projection weight: pad columns are zero (logit contribution 0)
    w_k = jnp.zeros((fsz, groups, v_pad), matmul_dtype)
    w_k = w_k.at[:, :, :num_vars].set(
        jnp.asarray(w).reshape(fsz, groups, num_vars).astype(matmul_dtype))
    w_k = w_k.reshape(fsz, gv_pad)

    # bias: pad columns get -1e9 so they never win argmax / softmax-underflow
    b_k = jnp.full((groups, v_pad), -1e9, jnp.float32)
    b_k = b_k.at[:, :num_vars].set(
        jnp.asarray(b, jnp.float32).reshape(groups, num_vars))
    b_k = b_k.reshape(1, gv_pad)

    # block-diagonal codebook (gv_pad, vqd_pad): out = one_hot_all @ cb, 1 matmul
    cbm = jnp.tile(codebook, (groups, 1)) if combine_groups else codebook
    cb_g = jnp.asarray(cbm, jnp.float32).reshape(groups, num_vars, var_dim)
    cb_gp = jnp.zeros((groups, v_pad, var_dim), jnp.float32
                      ).at[:, :num_vars, :].set(cb_g)
    eye_g = jnp.eye(groups, dtype=jnp.float32)
    cb_bd = jnp.einsum('gvd,gh->gvhd', cb_gp, eye_g).reshape(gv_pad, vq_dim)
    cb_k = jnp.zeros((gv_pad, vqd_pad), matmul_dtype
                     ).at[:, :vq_dim].set(cb_bd.astype(matmul_dtype))

    # --- N tiling: (num_partitions parallel) x (inner_tiles arbitrary) -----
    block_n = max(8, (int(block_n) // 8) * 8)
    block_n = min(block_n, ((n + 7) // 8) * 8)
    tiles = -(-n // block_n)
    tiles = -(-tiles // num_partitions) * num_partitions
    inner_tiles = tiles // num_partitions
    n_pad = tiles * block_n
    has_tail = (n_pad != n)

    # single cast directly to the matmul dtype (no f32 detour), then pad rows
    x_k = jnp.asarray(x).reshape(n, fsz).astype(matmul_dtype)
    if has_tail:
        x_k = jnp.pad(x_k, ((0, n_pad - n), (0, 0)))

    kernel = functools.partial(_gvq_kernel, groups=groups, v_pad=v_pad,
                               inner_tiles=inner_tiles, n_valid=n,
                               has_tail=has_tail)

    # --- VMEM budget computed from the real footprint ----------------------
    itemsize = jnp.dtype(matmul_dtype).itemsize
    footprint = (
        2 * block_n * fsz * itemsize          # x tile (double-buffered)
        + 2 * fsz * gv_pad * itemsize         # W (resident, 2 buffers)
        + 2 * gv_pad * 4                      # bias
        + 2 * gv_pad * vqd_pad * itemsize     # codebook
        + 2 * block_n * vqd_pad * 4           # out tile
        + 2 * 2 * 8 * gv_pad * 4              # stat accumulators
        + block_n * gv_pad * itemsize         # one-hot scratch
        + 2 * block_n * gv_pad * 4            # logits / softmax intermediates
    )
    vmem_limit = int(min(max(int(footprint * 1.5) + (4 << 20), 16 << 20),
                         64 << 20))            # stay inside v7x per-TC VMEM

    cost = pl.CostEstimate(
        flops=2 * n_pad * fsz * gv_pad
        + 2 * n_pad * gv_pad * vqd_pad
        + 4 * n_pad * gv_pad,                  # stat reductions on the MXU
        transcendentals=n_pad * gv_pad,
        bytes_accessed=itemsize * (n_pad * fsz + fsz * gv_pad + gv_pad * vqd_pad)
        + 4 * (n_pad * vqd_pad + 4 * num_partitions * 8 * gv_pad + gv_pad),
    )

    stats_rows = num_partitions * 8
    out, hard_sums, soft_sums = pl.pallas_call(
        kernel,
        out_shape=(
            jax.ShapeDtypeStruct((n_pad, vqd_pad), jnp.float32),
            jax.ShapeDtypeStruct((stats_rows, gv_pad), jnp.float32),
            jax.ShapeDtypeStruct((stats_rows, gv_pad), jnp.float32),
        ),
        grid_spec=pltpu.PrefetchScalarGridSpec(
            num_scalar_prefetch=0,
            grid=(num_partitions, inner_tiles),
            in_specs=[
                pl.BlockSpec((block_n, fsz),
                             lambda c, i: (c * inner_tiles + i, 0)),     # x tile
                pl.BlockSpec((fsz, gv_pad), lambda c, i: (0, 0)),        # W
                pl.BlockSpec((1, gv_pad), lambda c, i: (0, 0)),          # b
                pl.BlockSpec((gv_pad, vqd_pad), lambda c, i: (0, 0)),    # codebook
            ],
            out_specs=(
                pl.BlockSpec((block_n, vqd_pad),
                             lambda c, i: (c * inner_tiles + i, 0)),     # quantized
                pl.BlockSpec((8, gv_pad), lambda c, i: (c, 0)),          # hard stats
                pl.BlockSpec((8, gv_pad), lambda c, i: (c, 0)),          # soft stats
            ),
            scratch_shapes=[
                pltpu.VMEM((block_n, gv_pad), matmul_dtype),             # one-hots
            ],
        ),
        compiler_params=pltpu.CompilerParams(
            dimension_semantics=("parallel", "arbitrary"),
            vmem_limit_bytes=vmem_limit,
        ),
        cost_estimate=cost,
    )(x_k, w_k, b_k, cb_k)

    inv_n = 1.0 / n
    hard_probs = (hard_sums.reshape(num_partitions, 8, groups, v_pad)[:, 0]
                  .sum(axis=0)[:, :num_vars] * inv_n)
    avg_probs = (soft_sums.reshape(num_partitions, 8, groups, v_pad)[:, 0]
                 .sum(axis=0)[:, :num_vars] * inv_n)

    def _perplexity(p):
        return jnp.exp(-jnp.sum(p * jnp.log(p + 1e-7), axis=-1)).sum()

    xq = out[:n, :vq_dim].reshape(bsz, tsz, vq_dim)
    if not time_first:
        xq = jnp.swapaxes(xq, 1, 2)

    return {
        "num_vars": num_vars * groups,
        "code_perplexity": _perplexity(hard_probs),
        "prob_perplexity": _perplexity(avg_probs),
        "temp": curr_temp,
        "x": xq,
    }


def _reference_forward(x, w, b, cb, groups, num_vars, vq_dim, combine_groups=False):
    """Pure-JAX reference of the eval-mode torch forward."""
    bsz, tsz, fsz = x.shape
    flat = x.reshape(-1, fsz)
    logits = flat @ w + jnp.asarray(b).reshape(1, -1)            # (N, G*V)
    lg = logits.reshape(bsz * tsz * groups, num_vars)
    k = jnp.argmax(lg, axis=-1)
    hard = jax.nn.one_hot(k, num_vars, dtype=jnp.float32)
    hard = hard.reshape(bsz * tsz, groups, num_vars)
    hard_probs = hard.mean(axis=0)
    code_ppl = jnp.exp(-jnp.sum(hard_probs * jnp.log(hard_probs + 1e-7), -1)).sum()
    avg_probs = jax.nn.softmax(
        logits.reshape(bsz * tsz, groups, num_vars), axis=-1).mean(axis=0)
    prob_ppl = jnp.exp(-jnp.sum(avg_probs * jnp.log(avg_probs + 1e-7), -1)).sum()
    cbm = jnp.tile(cb, (groups, 1)) if combine_groups else cb
    xq = hard.reshape(bsz * tsz, groups * num_vars, 1) * cbm
    xq = xq.reshape(bsz * tsz, groups, num_vars, -1).sum(-2).reshape(bsz, tsz, -1)
    return xq, code_ppl, prob_ppl


if __name__ == "__main__":
    # module config (small, consistent with the fairseq module)
    dim = 32          # input channels
    num_vars = 16     # codebook entries per group
    groups = 2
    vq_dim = 64
    combine_groups = False
    time_first = True
    temp = (2.0, 0.5, 0.999995)

    bsz, tsz = 2, 9   # N = 18 -> block_n=8, 2 partitions: 4 tiles, masked tail
    var_dim = vq_dim // groups
    gv = groups * num_vars

    key = jax.random.PRNGKey(0)
    k_vars, k_w, k_x = jax.random.split(key, 3)

    # nn.Parameter vars: uniform_ init, shape (1, num_groups*num_vars, var_dim)
    codebook = jax.random.uniform(k_vars, (gv, var_dim), dtype=jnp.float32)
    # weight_proj = nn.Linear(dim, groups*num_vars), weight ~ N(0,1), bias = 0
    w = jax.random.normal(k_w, (dim, gv), dtype=jnp.float32)   # transposed weight
    b = jnp.zeros((1, gv), dtype=jnp.float32)

    x = jax.random.normal(k_x, (bsz, tsz, dim), dtype=jnp.float32)

    # ---- exact (f32) path, multi-tile grid + padded, masked tail tile ----
    result = gumbel_vq_forward(
        x, w, b, codebook,
        groups=groups, num_vars=num_vars, vq_dim=vq_dim,
        time_first=time_first, combine_groups=combine_groups,
        curr_temp=temp[0], block_n=8, num_partitions=2,
        matmul_dtype=jnp.float32)
    jax.block_until_ready(result["x"])

    ref_x, ref_code_ppl, ref_prob_ppl = _reference_forward(
        x, w, b, codebook, groups, num_vars, vq_dim, combine_groups)
    np.testing.assert_allclose(np.asarray(result["x"]), np.asarray(ref_x),
                               rtol=1e-5, atol=1e-5)
    np.testing.assert_allclose(float(result["code_perplexity"]),
                               float(ref_code_ppl), rtol=1e-4)
    np.testing.assert_allclose(float(result["prob_perplexity"]),
                               float(ref_prob_ppl), rtol=5e-4)

    # ---- exact (f32) path with no tail (has_tail=False branch) ----
    x2 = jax.random.normal(jax.random.PRNGKey(1), (2, 8, dim), dtype=jnp.float32)
    result2 = gumbel_vq_forward(
        x2, w, b, codebook,
        groups=groups, num_vars=num_vars, vq_dim=vq_dim,
        time_first=time_first, combine_groups=combine_groups,
        curr_temp=temp[0], block_n=8, num_partitions=2,
        matmul_dtype=jnp.float32)
    jax.block_until_ready(result2["x"])
    ref2_x, ref2_code_ppl, ref2_prob_ppl = _reference_forward(
        x2, w, b, codebook, groups, num_vars, vq_dim, combine_groups)
    np.testing.assert_allclose(np.asarray(result2["x"]), np.asarray(ref2_x),
                               rtol=1e-5, atol=1e-5)
    np.testing.assert_allclose(float(result2["prob_perplexity"]),
                               float(ref2_prob_ppl), rtol=5e-4)

    # ---- bf16 MXU path (fast path on all generations): sanity-check only ----
    result_bf16 = gumbel_vq_forward(
        x, w, b, codebook,
        groups=groups, num_vars=num_vars, vq_dim=vq_dim,
        time_first=time_first, combine_groups=combine_groups,
        curr_temp=temp[0], block_n=8, num_partitions=2,
        matmul_dtype=jnp.bfloat16)
    jax.block_until_ready(result_bf16["x"])
    assert result_bf16["x"].shape == (bsz, tsz, vq_dim)
    assert bool(jnp.all(jnp.isfinite(result_bf16["x"])))
    assert bool(jnp.isfinite(result_bf16["prob_perplexity"]))

    print("KERNEL_OK")
</pallas_src>

<mosaic_0001>
module attributes {stable_mosaic.version = 11 : i64} {
  func.func @_gvq_kernel(%arg0: i32, %arg1: i32, %arg2: memref<8x32xf32, #tpu.memory_space<vmem>>, %arg3: memref<32x256xf32, #tpu.memory_space<vmem>>, %arg4: memref<1x256xf32, #tpu.memory_space<vmem>>, %arg5: memref<256x128xf32, #tpu.memory_space<vmem>>, %arg6: memref<8x128xf32, #tpu.memory_space<vmem>>, %arg7: memref<8x256xf32, #tpu.memory_space<vmem>>, %arg8: memref<8x256xf32, #tpu.memory_space<vmem>>, %arg9: memref<8x256xf32, #tpu.memory_space<vmem>>) attributes {dimension_semantics = [#tpu.dimension_semantics<parallel>, #tpu.dimension_semantics<arbitrary>], iteration_bounds = array<i64: 2, 2>, scalar_prefetch = 0 : i64, scratch_operands = 1 : i64, tpu.core_type = #tpu.core_type<tc>, window_params = [{transform_indices = @transform_0, window_bounds = array<i64: 8, 32>}, {pipeline_mode = #tpu.pipeline_mode<synchronous>, transform_indices = @transform_1, window_bounds = array<i64: 32, 256>}, {pipeline_mode = #tpu.pipeline_mode<synchronous>, transform_indices = @transform_2, window_bounds = array<i64: 1, 256>}, {pipeline_mode = #tpu.pipeline_mode<synchronous>, transform_indices = @transform_3, window_bounds = array<i64: 256, 128>}, {transform_indices = @transform_4, window_bounds = array<i64: 8, 128>}, {transform_indices = @transform_5, window_bounds = array<i64: 8, 256>}, {transform_indices = @transform_6, window_bounds = array<i64: 8, 256>}]} {
    %c0_i32 = arith.constant 0 : i32
    %0 = arith.cmpi eq, %arg1, %c0_i32 : i32
    %1 = arith.extui %0 : i1 to i32
    %c0_i32_0 = arith.constant 0 : i32
    %2 = arith.cmpi ne, %1, %c0_i32_0 : i32
    scf.if %2 {
      %cst_40 = arith.constant 0.000000e+00 : f32
      %81 = vector.broadcast %cst_40 : f32 to vector<8x256xf32>
      %c0_41 = arith.constant 0 : index
      %c0_42 = arith.constant 0 : index
      %82 = vector.load %arg7[%c0_41, %c0_42] : memref<8x256xf32, #tpu.memory_space<vmem>>, vector<8x256xf32>
      tpu.vector_store %arg7[%c0_41, %c0_42], %81 {strides = array<i32>} : memref<8x256xf32, #tpu.memory_space<vmem>>, vector<8x256xf32>,
      %cst_43 = arith.constant 0.000000e+00 : f32
      %83 = vector.broadcast %cst_43 : f32 to vector<8x256xf32>
      %c0_44 = arith.constant 0 : index
      %c0_45 = arith.constant 0 : index
      %84 = vector.load %arg8[%c0_44, %c0_45] : memref<8x256xf32, #tpu.memory_space<vmem>>, vector<8x256xf32>
      tpu.vector_store %arg8[%c0_44, %c0_45], %83 {strides = array<i32>} : memref<8x256xf32, #tpu.memory_space<vmem>>, vector<8x256xf32>,
    } else {
    }
    %c0 = arith.constant 0 : index
    %c0_1 = arith.constant 0 : index
    %3 = vector.load %arg2[%c0, %c0_1] : memref<8x32xf32, #tpu.memory_space<vmem>>, vector<8x32xf32>
    %c0_2 = arith.constant 0 : index
    %c0_3 = arith.constant 0 : index
    %4 = vector.load %arg3[%c0_2, %c0_3] : memref<32x256xf32, #tpu.memory_space<vmem>>, vector<32x256xf32>
    %cst = arith.constant dense<0.000000e+00> : vector<8x256xf32>
    %5 = tpu.matmul %3, %4, %cst {dimension_numbers = #tpu.dot_dimension_numbers<[1], [0], [0], [1], [0, 0, 1, 1], [], []>} : vector<8x32xf32>, vector<32x256xf32>, vector<8x256xf32> -> vector<8x256xf32>
    %c0_4 = arith.constant 0 : index
    %c0_5 = arith.constant 0 : index
    %6 = vector.load %arg4[%c0_4, %c0_5] : memref<1x256xf32, #tpu.memory_space<vmem>>, vector<1x256xf32>
    %7 = vector.broadcast %6 : vector<1x256xf32> to vector<8x256xf32>
    %8 = arith.addf %5, %7 : vector<8x256xf32>
    %c2_i32 = arith.constant 2 : i32
    %9 = arith.muli %arg0, %c2_i32 : i32
    %10 = arith.addi %9, %arg1 : i32
    %c8_i32 = arith.constant 8 : i32
    %11 = arith.muli %10, %c8_i32 : i32
    %12 = tpu.iota {dimensions = array<i32: 1>} : vector<1x8xi32>
    %13 = vector.broadcast %11 : i32 to vector<1x8xi32>
    %14 = arith.addi %13, %12 : vector<1x8xi32>
    %c18_i32 = arith.constant 18 : i32
    %15 = vector.broadcast %c18_i32 : i32 to vector<1x8xi32>
    %16 = arith.cmpi slt, %14, %15 : vector<1x8xi32>
    %17 = arith.extui %16 : vector<1x8xi1> to vector<1x8xi32>
    %18 = arith.sitofp %17 : vector<1x8xi32> to vector<1x8xf32>
    %19 = tpu.iota {dimensions = array<i32: 1>} : vector<8x128xi32>
    %20 = vector.extract_strided_slice %8 {offsets = [0, 0], sizes = [8, 128], strides = [1, 1]} : vector<8x256xf32> to vector<8x128xf32>
    %cst_6 = arith.constant dense<0xFF800000> : vector<8xf32>
    %21 = vector.multi_reduction <maximumf>, %20, %cst_6 [1] : vector<8x128xf32> to vector<8xf32>
    %22 = vector.shape_cast %21 : vector<8xf32> to vector<8x1xf32>
    %23 = vector.broadcast %22 : vector<8x1xf32> to vector<8x128xf32>
    %24 = arith.cmpf oeq, %20, %23 : vector<8x128xf32>
    %c128_i32 = arith.constant 128 : i32
    %25 = vector.broadcast %c128_i32 : i32 to vector<8x128xi32>
    %26 = arith.select %24, %19, %25 : vector<8x128xi1>, vector<8x128xi32>
    %cst_7 = arith.constant dense<2147483647> : vector<8xi32>
    %27 = vector.multi_reduction <minsi>, %26, %cst_7 [1] : vector<8x128xi32> to vector<8xi32>
    %28 = vector.shape_cast %27 : vector<8xi32> to vector<8x1xi32>
    %29 = vector.broadcast %28 : vector<8x1xi32> to vector<8x128xi32>
    %30 = arith.cmpi eq, %19, %29 : vector<8x128xi32>
    %31 = arith.extui %30 : vector<8x128xi1> to vector<8x128xi32>
    %32 = arith.sitofp %31 : vector<8x128xi32> to vector<8x128xf32>
    %c0_8 = arith.constant 0 : index
    %c0_9 = arith.constant 0 : index
    %33 = vector.load %arg9[%c0_8, %c0_9] : memref<8x256xf32, #tpu.memory_space<vmem>>, vector<8x128xf32>
    tpu.vector_store %arg9[%c0_8, %c0_9], %32 {strides = array<i32>} : memref<8x256xf32, #tpu.memory_space<vmem>>, vector<8x128xf32>,
    %34 = vector.broadcast %22 : vector<8x1xf32> to vector<8x128xf32>
    %35 = arith.subf %20, %34 : vector<8x128xf32>
    %36 = math.exp %35 : vector<8x128xf32>
    %cst_10 = arith.constant dense<0.000000e+00> : vector<8xf32>
    %37 = vector.multi_reduction <add>, %36, %cst_10 [1] : vector<8x128xf32> to vector<8xf32>
    %38 = vector.shape_cast %37 : vector<8xf32> to vector<8x1xf32>
    %39 = tpu.reciprocal %38 : vector<8x1xf32> -> vector<8x1xf32>
    %40 = vector.broadcast %39 : vector<8x1xf32> to vector<8x128xf32>
    %41 = arith.mulf %36, %40 : vector<8x128xf32>
    %c0_11 = arith.constant 0 : index
    %c0_12 = arith.constant 0 : index
    %42 = vector.load %arg8[%c0_11, %c0_12] : memref<8x256xf32, #tpu.memory_space<vmem>>, vector<1x128xf32>
    %cst_13 = arith.constant dense<0.000000e+00> : vector<1x128xf32>
    %43 = tpu.matmul %18, %41, %cst_13 {dimension_numbers = #tpu.dot_dimension_numbers<[1], [0], [0], [1], [0, 0, 1, 1], [], []>} : vector<1x8xf32>, vector<8x128xf32>, vector<1x128xf32> -> vector<1x128xf32>
    %44 = arith.addf %42, %43 : vector<1x128xf32>
    %c0_14 = arith.constant 0 : index
    %c0_15 = arith.constant 0 : index
    %45 = vector.load %arg8[%c0_14, %c0_15] : memref<8x256xf32, #tpu.memory_space<vmem>>, vector<1x128xf32>
    tpu.vector_store %arg8[%c0_14, %c0_15], %44 {strides = array<i32>} : memref<8x256xf32, #tpu.memory_space<vmem>>, vector<1x128xf32>,
    %46 = vector.extract_strided_slice %8 {offsets = [0, 128], sizes = [8, 128], strides = [1, 1]} : vector<8x256xf32> to vector<8x128xf32>
    %cst_16 = arith.constant dense<0xFF800000> : vector<8xf32>
    %47 = vector.multi_reduction <maximumf>, %46, %cst_16 [1] : vector<8x128xf32> to vector<8xf32>
    %48 = vector.shape_cast %47 : vector<8xf32> to vector<8x1xf32>
    %49 = vector.broadcast %48 : vector<8x1xf32> to vector<8x128xf32>
    %50 = arith.cmpf oeq, %46, %49 : vector<8x128xf32>
    %c128_i32_17 = arith.constant 128 : i32
    %51 = vector.broadcast %c128_i32_17 : i32 to vector<8x128xi32>
    %52 = arith.select %50, %19, %51 : vector<8x128xi1>, vector<8x128xi32>
    %cst_18 = arith.constant dense<2147483647> : vector<8xi32>
    %53 = vector.multi_reduction <minsi>, %52, %cst_18 [1] : vector<8x128xi32> to vector<8xi32>
    %54 = vector.shape_cast %53 : vector<8xi32> to vector<8x1xi32>
    %55 = vector.broadcast %54 : vector<8x1xi32> to vector<8x128xi32>
    %56 = arith.cmpi eq, %19, %55 : vector<8x128xi32>
    %57 = arith.extui %56 : vector<8x128xi1> to vector<8x128xi32>
    %58 = arith.sitofp %57 : vector<8x128xi32> to vector<8x128xf32>
    %c0_19 = arith.constant 0 : index
    %c128 = arith.constant 128 : index
    %59 = vector.load %arg9[%c0_19, %c128] : memref<8x256xf32, #tpu.memory_space<vmem>>, vector<8x128xf32>
    tpu.vector_store %arg9[%c0_19, %c128], %58 {strides = array<i32>} : memref<8x256xf32, #tpu.memory_space<vmem>>, vector<8x128xf32>,
    %60 = vector.broadcast %48 : vector<8x1xf32> to vector<8x128xf32>
    %61 = arith.subf %46, %60 : vector<8x128xf32>
    %62 = math.exp %61 : vector<8x128xf32>
    %cst_20 = arith.constant dense<0.000000e+00> : vector<8xf32>
    %63 = vector.multi_reduction <add>, %62, %cst_20 [1] : vector<8x128xf32> to vector<8xf32>
    %64 = vector.shape_cast %63 : vector<8xf32> to vector<8x1xf32>
    %65 = tpu.reciprocal %64 : vector<8x1xf32> -> vector<8x1xf32>
    %66 = vector.broadcast %65 : vector<8x1xf32> to vector<8x128xf32>
    %67 = arith.mulf %62, %66 : vector<8x128xf32>
    %c0_21 = arith.constant 0 : index
    %c128_22 = arith.constant 128 : index
    %68 = vector.load %arg8[%c0_21, %c128_22] : memref<8x256xf32, #tpu.memory_space<vmem>>, vector<1x128xf32>
    %cst_23 = arith.constant dense<0.000000e+00> : vector<1x128xf32>
    %69 = tpu.matmul %18, %67, %cst_23 {dimension_numbers = #tpu.dot_dimension_numbers<[1], [0], [0], [1], [0, 0, 1, 1], [], []>} : vector<1x8xf32>, vector<8x128xf32>, vector<1x128xf32> -> vector<1x128xf32>
    %70 = arith.addf %68, %69 : vector<1x128xf32>
    %c0_24 = arith.constant 0 : index
    %c128_25 = arith.constant 128 : index
    %71 = vector.load %arg8[%c0_24, %c128_25] : memref<8x256xf32, #tpu.memory_space<vmem>>, vector<1x128xf32>
    tpu.vector_store %arg8[%c0_24, %c128_25], %70 {strides = array<i32>} : memref<8x256xf32, #tpu.memory_space<vmem>>, vector<1x128xf32>,
    %c0_26 = arith.constant 0 : index
    %c0_27 = arith.constant 0 : index
    %72 = vector.load %arg7[%c0_26, %c0_27] : memref<8x256xf32, #tpu.memory_space<vmem>>, vector<1x256xf32>
    %c0_28 = arith.constant 0 : index
    %c0_29 = arith.constant 0 : index
    %73 = vector.load %arg9[%c0_28, %c0_29] : memref<8x256xf32, #tpu.memory_space<vmem>>, vector<8x256xf32>
    %cst_30 = arith.constant dense<0.000000e+00> : vector<1x256xf32>
    %74 = tpu.matmul %18, %73, %cst_30 {dimension_numbers = #tpu.dot_dimension_numbers<[1], [0], [0], [1], [0, 0, 1, 1], [], []>} : vector<1x8xf32>, vector<8x256xf32>, vector<1x256xf32> -> vector<1x256xf32>
    %75 = arith.addf %72, %74 : vector<1x256xf32>
    %c0_31 = arith.constant 0 : index
    %c0_32 = arith.constant 0 : index
    %76 = vector.load %arg7[%c0_31, %c0_32] : memref<8x256xf32, #tpu.memory_space<vmem>>, vector<1x256xf32>
    tpu.vector_store %arg7[%c0_31, %c0_32], %75 {strides = array<i32>} : memref<8x256xf32, #tpu.memory_space<vmem>>, vector<1x256xf32>,
    %c0_33 = arith.constant 0 : index
    %c0_34 = arith.constant 0 : index
    %77 = vector.load %arg9[%c0_33, %c0_34] : memref<8x256xf32, #tpu.memory_space<vmem>>, vector<8x256xf32>
    %c0_35 = arith.constant 0 : index
    %c0_36 = arith.constant 0 : index
    %78 = vector.load %arg5[%c0_35, %c0_36] : memref<256x128xf32, #tpu.memory_space<vmem>>, vector<256x128xf32>
    %cst_37 = arith.constant dense<0.000000e+00> : vector<8x128xf32>
    %79 = tpu.matmul %77, %78, %cst_37 {dimension_numbers = #tpu.dot_dimension_numbers<[1], [0], [0], [1], [0, 0, 1, 1], [], []>} : vector<8x256xf32>, vector<256x128xf32>, vector<8x128xf32> -> vector<8x128xf32>
    %c0_38 = arith.constant 0 : index
    %c0_39 = arith.constant 0 : index
    %80 = vector.load %arg6[%c0_38, %c0_39] : memref<8x128xf32, #tpu.memory_space<vmem>>, vector<8x128xf32>
    tpu.vector_store %arg6[%c0_38, %c0_39], %79 {strides = array<i32>} : memref<8x128xf32, #tpu.memory_space<vmem>>, vector<8x128xf32>,
    return
  }
  func.func @transform_0(%arg0: i32, %arg1: i32) -> (i32, i32) {
    %c2_i32 = arith.constant 2 : i32
    %0 = arith.muli %arg0, %c2_i32 : i32
    %1 = arith.addi %0, %arg1 : i32
    %c0_i32 = arith.constant 0 : i32
    %c0_i32_0 = arith.constant 0 : i32
    return %1, %c0_i32 : i32, i32
  }
  func.func @transform_1(%arg0: i32, %arg1: i32) -> (i32, i32) {
    %c0_i32 = arith.constant 0 : i32
    %c0_i32_0 = arith.constant 0 : i32
    %c0_i32_1 = arith.constant 0 : i32
    return %c0_i32, %c0_i32_0 : i32, i32
  }
  func.func @transform_2(%arg0: i32, %arg1: i32) -> (i32, i32) {
    %c0_i32 = arith.constant 0 : i32
    %c0_i32_0 = arith.constant 0 : i32
    %c0_i32_1 = arith.constant 0 : i32
    return %c0_i32, %c0_i32_0 : i32, i32
  }
  func.func @transform_3(%arg0: i32, %arg1: i32) -> (i32, i32) {
    %c0_i32 = arith.constant 0 : i32
    %c0_i32_0 = arith.constant 0 : i32
    %c0_i32_1 = arith.constant 0 : i32
    return %c0_i32, %c0_i32_0 : i32, i32
  }
  func.func @transform_4(%arg0: i32, %arg1: i32) -> (i32, i32) {
    %c2_i32 = arith.constant 2 : i32
    %0 = arith.muli %arg0, %c2_i32 : i32
    %1 = arith.addi %0, %arg1 : i32
    %c0_i32 = arith.constant 0 : i32
    %c0_i32_0 = arith.constant 0 : i32
    return %1, %c0_i32 : i32, i32
  }
  func.func @transform_5(%arg0: i32, %arg1: i32) -> (i32, i32) {
    %c0_i32 = arith.constant 0 : i32
    %c0_i32_0 = arith.constant 0 : i32
    return %arg0, %c0_i32 : i32, i32
  }
  func.func @transform_6(%arg0: i32, %arg1: i32) -> (i32, i32) {
    %c0_i32 = arith.constant 0 : i32
    %c0_i32_0 = arith.constant 0 : i32
    return %arg0, %c0_i32 : i32, i32
  }
}

</mosaic_0001>

<llo_original>
// kernel: tpu_custom_call.1
$region0: #{tpu_custom_call.1}
  #allocation0 [shape = 'u32[]', space=smem, size = 0x4, offset = 0x4, fixed_abs, tag = 'smem constant byte address 0x4 - core index']
  #allocation1 [shape = 'u32[72,128]{1,0:T(1,128)}', space=vmem, size = 0x9000, scoped, tag = 'internal scratch']
  #allocation2 [shape = 'f32[8,256]{1,0:T(8,128)}', space=vmem, size = 0x2000, scoped, tag = 'scratch operand']
  %s0 = inlined_call_operand.hbm [shape: f32[32,32], index: 0, kind: input, shape index: {}]
  %s1 = inlined_call_operand.hbm [shape: f32[32,256], index: 1, kind: input, shape index: {}]
  %s2 = inlined_call_operand.hbm [shape: f32[1,256], index: 2, kind: input, shape index: {}]
  %s3 = inlined_call_operand.hbm [shape: f32[256,128], index: 3, kind: input, shape index: {}]
  %s4 = inlined_call_operand.hbm [shape: f32[32,128], index: 4, kind: output, shape index: {0}]
  %s5 = inlined_call_operand.hbm [shape: f32[16,256], index: 5, kind: output, shape index: {1}]
  %s6 = inlined_call_operand.hbm [shape: f32[16,256], index: 6, kind: output, shape index: {2}]
  %7 = xla_tuple %s4, %s5, %s6
  %s8 = sld [smem:[#allocation0]]
  $region85: #{tpu_custom_call.1} parent=0
    _
  %s10 = ssub.s32 1, %s8
  %s11 = scalar_select 0, %s10, %s8
  $region1: #{tpu_custom_call.1} parent=0
    #allocation3 [shape = 'u8[8192]{0}', space=vmem, size = 0x2000, scoped, tag = 'input window, operand 0']
    #allocation4 [shape = 's32[2]{0}', space=sflag, size = 0x8, scoped, tag = 'scoped memory for tpu_custom_call.1']
    #allocation5 [shape = 's32[2]{0}', space=sflag, size = 0x8, scoped, tag = 'scoped memory for tpu_custom_call.1']
    #allocation6 [shape = 'u8[32768]{0}', space=vmem, size = 0x8000, scoped, tag = 'input window, operand 1, single buffered']
    #allocation7 [shape = 's32[1]{0}', space=sflag, size = 0x4, scoped, tag = 'scoped memory for tpu_custom_call.1']
    #allocation8 [shape = 'u8[1024]{0}', space=vmem, size = 0x400, scoped, tag = 'input window, operand 2, single buffered']
    #allocation9 [shape = 'u8[131072]{0}', space=vmem, size = 0x20000, scoped, tag = 'input window, operand 3, single buffered']
    #allocation10 [shape = 's32[1]{0}', space=sflag, size = 0x4, scoped, tag = 'scoped memory for tpu_custom_call.1']
    #allocation11 [shape = 'u8[8192]{0}', space=vmem, size = 0x2000, scoped, tag = 'output window, operand 0']
    #allocation12 [shape = 'u8[16384]{0}', space=vmem, size = 0x4000, scoped, tag = 'output window, operand 1']
    #allocation13 [shape = 's32[2]{0}', space=sflag, size = 0x8, scoped, tag = 'scoped memory for tpu_custom_call.1']
    #allocation14 [shape = 'u8[16384]{0}', space=vmem, size = 0x4000, scoped, tag = 'output window, operand 2']
    %12 = vsyncpa [#allocation4], 0
    %s13 = scalar_lea.sflag [#allocation4], 1
    %14 = vsyncpa %s13, 0
    %15 = vsyncpa [#allocation7], 0
    %16 = vsyncpa [#allocation10], 0
    %17 = vsyncpa [#allocation5], 0
    %s18 = scalar_lea.sflag [#allocation5], 1
    %19 = vsyncpa %s18, 0
    %20 = vsyncpa [#allocation13], 0
    %s21 = scalar_lea.sflag [#allocation13], 1
    %22 = vsyncpa %s21, 0
    loop: start=0, step=1, limit=6
    $region2: #{tpu_custom_call.1} parent=1 // loop_pre_header
      _
    $region3: #{tpu_custom_call.1} parent=1 // loop_header
      %s24 = sphi 0, %s28
      %p25 = scmp.ge.s32.totalorder %s24, 6
      %s31 = sphi 0, %s43
      %s32 = sphi 0, %s39
      %s33 = sphi 0, %s31
      %s34 = sphi 0, %s32
      %s35 = sphi 0, %s33
      %s36 = sphi 0, %s34
      %s50 = sphi 0, %s52
      %s53 = sphi 0, %s50
      %s54 = sphi 0, %s53
      %s70 = sphi 0, %s54
      %s74 = sphi 0, %s74
      %s76 = sphi 0, %s74
      %s77 = sphi 0, %s76
      %s91 = sphi 0, %s77
      %s95 = sphi 0, %s95
      %s97 = sphi 0, %s95
      %s98 = sphi 0, %s97
      %s112 = sphi 0, %s98
      %s116 = sphi 0, %s116
      %s118 = sphi 0, %s116
      %s119 = sphi 0, %s118
      %s133 = sphi 0, %s119
      %s143 = sphi 0, %s145
      %s146 = sphi 0, %s143
      %s147 = sphi 0, %s146
      %s163 = sphi 0, %s147
      %s169 = sphi 0, %s171
      %s172 = sphi 0, %s169
      %s173 = sphi 0, %s172
      %s189 = sphi 0, %s173
      %s195 = sphi 0, %s197
      %s198 = sphi 0, %s195
      %s199 = sphi 0, %s198
      %s215 = sphi 0, %s199
    $region4: #{tpu_custom_call.1} parent=1 // loop_header_branch
      %27 = sbr.rel (%p25) target = $region8
    $region5: #{tpu_custom_call.1} parent=1 // loop_body
      %s29 = ssub.s32 %s24, 1
      %s30 = ssub.s32 %s24, 2
      %s37 = sadd.s32 1, %s32
      %p38 = scmp.ge.s32.totalorder %s37, 2
      %s39 = scalar_select %p38, 0, %s37
      %s40 = sadd.s32 1, %s31
      %s41 = scalar_select %p38, %s40, %s31
      %p42 = scmp.ge.s32.totalorder %s41, 2
      %s43 = scalar_select %p42, 0, %s41
      %s44 = smul.u32 %s31, 2
      %s45 = sadd.s32 %s44, %s32
      %s46 = smul.u32 %s43, 2
      %s47 = sadd.s32 %s46, %s39
      %s48 = ssub.s32 %s45, %s47
      %p49 = scmp.eq.s32.totalorder %s48, 0
      %s51 = sadd.s32 %s50, 1
      %s52 = scalar_select %p49, %s50, %s51
      %p55 = pneg %p49
      %p56 = scmp.eq.s32.totalorder %s24, 3
      %p57 = por %p55, %p56
      %p58 = scmp.ne.s32.totalorder %s50, %s53
      %p59 = scmp.eq.s32.totalorder %s24, 0
      %p60 = por %p58, %p59
      %p61 = scmp.ne.s32.totalorder %s50, %s53
      %p62 = scmp.eq.s32.totalorder %s29, 3
      %p63 = por %p61, %p62
      %p64 = scmp.ne.s32.totalorder %s53, %s54
      %p65 = scmp.eq.s32.totalorder %s29, 0
      %p66 = por %p64, %p65
      %p67 = scmp.ne.s32.totalorder %s53, %s54
      %p68 = scmp.eq.s32.totalorder %s30, 3
      %p69 = por %p67, %p68
      %p71 = scmp.ne.s32.totalorder %s54, %s70
      %p72 = scmp.eq.s32.totalorder %s30, 0
      %p73 = por %p71, %p72
      %s75 = sadd.s32 %s74, 1
      %p78 = scmp.eq.s32.totalorder %s24, 3
      %p79 = scmp.ne.s32.totalorder %s74, %s76
      %p80 = scmp.eq.s32.totalorder %s24, 0
      %p81 = por %p79, %p80
      %p82 = scmp.ne.s32.totalorder %s74, %s76
      %p83 = scmp.eq.s32.totalorder %s29, 3
      %p84 = por %p82, %p83
      %p85 = scmp.ne.s32.totalorder %s76, %s77
      %p86 = scmp.eq.s32.totalorder %s29, 0
      %p87 = por %p85, %p86
      %p88 = scmp.ne.s32.totalorder %s76, %s77
      %p89 = scmp.eq.s32.totalorder %s30, 3
      %p90 = por %p88, %p89
      %p92 = scmp.ne.s32.totalorder %s77, %s91
      %p93 = scmp.eq.s32.totalorder %s30, 0
      %p94 = por %p92, %p93
      %s96 = sadd.s32 %s95, 1
      %p99 = scmp.eq.s32.totalorder %s24, 3
      %p100 = scmp.ne.s32.totalorder %s95, %s97
      %p101 = scmp.eq.s32.totalorder %s24, 0
      %p102 = por %p100, %p101
      %p103 = scmp.ne.s32.totalorder %s95, %s97
      %p104 = scmp.eq.s32.totalorder %s29, 3
      %p105 = por %p103, %p104
      %p106 = scmp.ne.s32.totalorder %s97, %s98
      %p107 = scmp.eq.s32.totalorder %s29, 0
      %p108 = por %p106, %p107
      %p109 = scmp.ne.s32.totalorder %s97, %s98
      %p110 = scmp.eq.s32.totalorder %s30, 3
      %p111 = por %p109, %p110
      %p113 = scmp.ne.s32.totalorder %s98, %s112
      %p114 = scmp.eq.s32.totalorder %s30, 0
      %p115 = por %p113, %p114
      %s117 = sadd.s32 %s116, 1
      %p120 = scmp.eq.s32.totalorder %s24, 3
      %p121 = scmp.ne.s32.totalorder %s116, %s118
      %p122 = scmp.eq.s32.totalorder %s24, 0
      %p123 = por %p121, %p122
      %p124 = scmp.ne.s32.totalorder %s116, %s118
      %p125 = scmp.eq.s32.totalorder %s29, 3
      %p126 = por %p124, %p125
      %p127 = scmp.ne.s32.totalorder %s118, %s119
      %p128 = scmp.eq.s32.totalorder %s29, 0
      %p129 = por %p127, %p128
      %p130 = scmp.ne.s32.totalorder %s118, %s119
      %p131 = scmp.eq.s32.totalorder %s30, 3
      %p132 = por %p130, %p131
      %p134 = scmp.ne.s32.totalorder %s119, %s133
      %p135 = scmp.eq.s32.totalorder %s30, 0
      %p136 = por %p134, %p135
      %s137 = smul.u32 %s31, 2
      %s138 = sadd.s32 %s137, %s32
      %s139 = smul.u32 %s43, 2
      %s140 = sadd.s32 %s139, %s39
      %s141 = ssub.s32 %s138, %s140
      %p142 = scmp.eq.s32.totalorder %s141, 0
      %s144 = sadd.s32 %s143, 1
      %s145 = scalar_select %p142, %s143, %s144
      %p148 = pneg %p142
      %p149 = scmp.eq.s32.totalorder %s24, 3
      %p150 = por %p148, %p149
      %p151 = scmp.ne.s32.totalorder %s143, %s146
      %p152 = scmp.eq.s32.totalorder %s24, 0
      %p153 = por %p151, %p152
      %p154 = scmp.ne.s32.totalorder %s143, %s146
      %p155 = scmp.eq.s32.totalorder %s29, 3
      %p156 = por %p154, %p155
      %p157 = scmp.ne.s32.totalorder %s146, %s147
      %p158 = scmp.eq.s32.totalorder %s29, 0
      %p159 = por %p157, %p158
      %p160 = scmp.ne.s32.totalorder %s146, %s147
      %p161 = scmp.eq.s32.totalorder %s30, 3
      %p162 = por %p160, %p161
      %p164 = scmp.ne.s32.totalorder %s147, %s163
      %p165 = scmp.eq.s32.totalorder %s30, 0
      %p166 = por %p164, %p165
      %s167 = ssub.s32 %s31, %s43
      %p168 = scmp.eq.s32.totalorder %s167, 0
      %s170 = sadd.s32 %s169, 1
      %s171 = scalar_select %p168, %s169, %s170
      %p174 = pneg %p168
      %p175 = scmp.eq.s32.totalorder %s24, 3
      %p176 = por %p174, %p175
      %p177 = scmp.ne.s32.totalorder %s169, %s172
      %p178 = scmp.eq.s32.totalorder %s24, 0
      %p179 = por %p177, %p178
      %p180 = scmp.ne.s32.totalorder %s169, %s172
      %p181 = scmp.eq.s32.totalorder %s29, 3
      %p182 = por %p180, %p181
      %p183 = scmp.ne.s32.totalorder %s172, %s173
      %p184 = scmp.eq.s32.totalorder %s29, 0
      %p185 = por %p183, %p184
      %p186 = scmp.ne.s32.totalorder %s172, %s173
      %p187 = scmp.eq.s32.totalorder %s30, 3
      %p188 = por %p186, %p187
      %p190 = scmp.ne.s32.totalorder %s173, %s189
      %p191 = scmp.eq.s32.totalorder %s30, 0
      %p192 = por %p190, %p191
      %s193 = ssub.s32 %s31, %s43
      %p194 = scmp.eq.s32.totalorder %s193, 0
      %s196 = sadd.s32 %s195, 1
      %s197 = scalar_select %p194, %s195, %s196
      %p200 = pneg %p194
      %p201 = scmp.eq.s32.totalorder %s24, 3
      %p202 = por %p200, %p201
      %p203 = scmp.ne.s32.totalorder %s195, %s198
      %p204 = scmp.eq.s32.totalorder %s24, 0
      %p205 = por %p203, %p204
      %p206 = scmp.ne.s32.totalorder %s195, %s198
      %p207 = scmp.eq.s32.totalorder %s29, 3
      %p208 = por %p206, %p207
      %p209 = scmp.ne.s32.totalorder %s198, %s199
      %p210 = scmp.eq.s32.totalorder %s29, 0
      %p211 = por %p209, %p210
      %p212 = scmp.ne.s32.totalorder %s198, %s199
      %p213 = scmp.eq.s32.totalorder %s30, 3
      %p214 = por %p212, %p213
      %p216 = scmp.ne.s32.totalorder %s199, %s215
      %p217 = scmp.eq.s32.totalorder %s30, 0
      %p218 = por %p216, %p217
      %p219 = scmp.le.s32.totalorder 1, %s24
      %p220 = scmp.lt.s32.totalorder %s24, 5
      %p221 = pnand %p219, %p220
      %p222 = pneg %p221
      // Predicated region
      $region9: #{tpu_custom_call.1} parent=5 // pred_check
        _
      $region10: #{tpu_custom_call.1} parent=5 // pred_check_branch
        %224 = sbr.rel (%p221) target = $region12
      $region11: #{tpu_custom_call.1} parent=5 // pred_region
        %s225 = ssub.s32 %s24, 1
        // Predicated region
        $region13: #{tpu_custom_call.1} parent=11 // pred_check
          %p226 = pneg %p87
        $region14: #{tpu_custom_call.1} parent=11 // pred_check_branch
          %228 = sbr.rel (%p226) target = $region16
        $region15: #{tpu_custom_call.1} parent=11 // pred_region
          %230 = vsyncadd [#allocation7], 0
          %s231 = sshll.u32 %s1, 4
          %s232 = int_to_ptr.hbm [resolvable:$true] %s231
          %s233 = sshll.u32 [#allocation6], 4
          %s234 = int_to_ptr.vmem [resolvable:$true] %s233
          %239 = dma.hbm_to_vmem [thread:$0]  %s232, 1024, %s234, [#allocation7], 256, 256, 16
        $region16: #{tpu_custom_call.1} parent=11 // pred_fallthru
          _
        // Predicated region
        $region17: #{tpu_custom_call.1} parent=11 // pred_check
          %p240 = pneg %p108
        $region18: #{tpu_custom_call.1} parent=11 // pred_check_branch
          %242 = sbr.rel (%p240) target = $region20
        $region19: #{tpu_custom_call.1} parent=11 // pred_region
          %244 = vsyncadd [#allocation7], 0
          %s246 = sshll.u32 %s2, 4
          %s247 = int_to_ptr.hbm [resolvable:$true] %s246
          %s248 = sshll.u32 [#allocation8], 4
          %s249 = int_to_ptr.vmem [resolvable:$true] %s248
          %251 = dma.hbm_to_vmem [thread:$0]  %s247, 32, %s249, [#allocation7]
        $region20: #{tpu_custom_call.1} parent=11 // pred_fallthru
          _
        // Predicated region
        $region21: #{tpu_custom_call.1} parent=11 // pred_check
          %p252 = pneg %p129
        $region22: #{tpu_custom_call.1} parent=11 // pred_check_branch
          %254 = sbr.rel (%p252) target = $region24
        $region23: #{tpu_custom_call.1} parent=11 // pred_region
          %256 = vsyncadd [#allocation10], 0
          %s257 = sshll.u32 %s3, 4
          %s258 = int_to_ptr.hbm [resolvable:$true] %s257
          %s259 = sshll.u32 [#allocation9], 4
          %s260 = int_to_ptr.vmem [resolvable:$true] %s259
          %265 = dma.hbm_to_vmem [thread:$0]  %s258, 4096, %s260, [#allocation10], 128, 128, 8
        $region24: #{tpu_custom_call.1} parent=11 // pred_fallthru
          _
      $region12: #{tpu_custom_call.1} parent=5 // pred_fallthru
        _
      %p266 = scmp.lt.s32.totalorder %s24, 4
      // Predicated region
      $region25: #{tpu_custom_call.1} parent=5 // pred_check
        %p267 = pneg %p266
      $region26: #{tpu_custom_call.1} parent=5 // pred_check_branch
        %269 = sbr.rel (%p267) target = $region28
      $region27: #{tpu_custom_call.1} parent=5 // pred_region
        // Predicated region
        $region29: #{tpu_custom_call.1} parent=27 // pred_check
          %p270 = pneg %p60
        $region30: #{tpu_custom_call.1} parent=27 // pred_check_branch
          %272 = sbr.rel (%p270) target = $region32
        $region31: #{tpu_custom_call.1} parent=27 // pred_region
          %s273 = sand.u32 %s50, 1
          %s274 = scalar_lea.sflag [#allocation4], %s273
          %s275 = sand.u32 %s50, 1
          %s276 = smul.addr %s275, 8
          %s277 = scalar_lea.vmem [#allocation3], %s276
          %s278 = smul.u32 %s31, 2
          %s279 = sadd.s32 %s278, %s32
          %281 = vsyncadd %s274, 0
          %s282 = smul.addr %s279, 8
          %s283 = scalar_lea.hbm %s0, %s282
          %s285 = sshll.u32 %s283, 4
          %s286 = int_to_ptr.hbm [resolvable:$true] %s285
          %s287 = sshll.u32 %s277, 4
          %s288 = int_to_ptr.vmem [resolvable:$true] %s287
          %290 = dma.hbm_to_vmem [thread:$0]  %s286, 128, %s288, %s274
        $region32: #{tpu_custom_call.1} parent=27 // pred_fallthru
          _
      $region28: #{tpu_custom_call.1} parent=5 // pred_fallthru
        _
      %p291 = scmp.le.s32.totalorder 1, %s24
      %p292 = scmp.lt.s32.totalorder %s24, 5
      %p293 = pnand %p291, %p292
      %p294 = pneg %p293
      // Predicated region
      $region33: #{tpu_custom_call.1} parent=5 // pred_check
        _
      $region34: #{tpu_custom_call.1} parent=5 // pred_check_branch
        %296 = sbr.rel (%p293) target = $region36
      $region35: #{tpu_custom_call.1} parent=5 // pred_region
        %s297 = ssub.s32 %s24, 1
        %s298 = sand.u32 %s53, 1
        %s299 = scalar_lea.sflag [#allocation4], %s298
        %s300 = sand.u32 %s53, 1
        %s301 = smul.addr %s300, 8
        %s302 = scalar_lea.vmem [#allocation3], %s301
        // Predicated region
        $region37: #{tpu_custom_call.1} parent=35 // pred_check
          %p303 = pneg %p66
        $region38: #{tpu_custom_call.1} parent=35 // pred_check_branch
          %305 = sbr.rel (%p303) target = $region40
        $region39: #{tpu_custom_call.1} parent=35 // pred_region
          %307 = dma.done %s299, 128
        $region40: #{tpu_custom_call.1} parent=35 // pred_fallthru
          _
        // Predicated region
        $region41: #{tpu_custom_call.1} parent=35 // pred_check
          %p308 = pneg %p87
        $region42: #{tpu_custom_call.1} parent=35 // pred_check_branch
          %310 = sbr.rel (%p308) target = $region44
        $region43: #{tpu_custom_call.1} parent=35 // pred_region
          %312 = dma.done [#allocation7], 1024
        $region44: #{tpu_custom_call.1} parent=35 // pred_fallthru
          _
        // Predicated region
        $region45: #{tpu_custom_call.1} parent=35 // pred_check
          %p313 = pneg %p108
        $region46: #{tpu_custom_call.1} parent=35 // pred_check_branch
          %315 = sbr.rel (%p313) target = $region48
        $region47: #{tpu_custom_call.1} parent=35 // pred_region
          %317 = dma.done [#allocation7], 32
        $region48: #{tpu_custom_call.1} parent=35 // pred_fallthru
          _
        // Predicated region
        $region49: #{tpu_custom_call.1} parent=35 // pred_check
          %p318 = pneg %p129
        $region50: #{tpu_custom_call.1} parent=35 // pred_check_branch
          %320 = sbr.rel (%p318) target = $region52
        $region51: #{tpu_custom_call.1} parent=35 // pred_region
          %322 = dma.done [#allocation10], 4096
        $region52: #{tpu_custom_call.1} parent=35 // pred_fallthru
          _
        %s323 = sand.u32 %s53, 1
        %s324 = scalar_lea.sflag [#allocation4], %s323
        %s325 = sand.u32 %s53, 1
        %s326 = smul.addr %s325, 8
        %s327 = scalar_lea.vmem [#allocation3], %s326
        %p328 = pneg %p66
        %p329 = pneg %p63
        %p330 = pneg %p87
        %p331 = pneg %p84
        %p332 = pneg %p108
        %p333 = pneg %p105
        %p334 = pneg %p129
        %p335 = pneg %p126
        %p336 = pneg %p159
        %p337 = pneg %p156
        %s338 = sand.u32 %s146, 1
        %s339 = scalar_lea.sflag [#allocation5], %s338
        %s340 = sand.u32 %s146, 1
        %s341 = smul.addr %s340, 8
        %s342 = scalar_lea.vmem [#allocation11], %s341
        %p343 = pneg %p185
        %p344 = pneg %p182
        %s345 = sand.u32 %s29, 1
        %s346 = scalar_lea.sflag [#allocation13], %s345
        %s347 = sand.u32 %s172, 1
        %s348 = smul.addr %s347, 16
        %s349 = scalar_lea.vmem [#allocation12], %s348
        %p350 = pneg %p211
        %p351 = pneg %p208
        %s352 = sand.u32 %s29, 1
        %s353 = scalar_lea.sflag [#allocation13], %s352
        %s354 = sand.u32 %s198, 1
        %s355 = smul.addr %s354, 16
        %s356 = scalar_lea.vmem [#allocation14], %s355
        %s357 = smul.u32 %s33, 2
        %s358 = sadd.s32 %s357, %s34
        %s359 = smul.u32 %s33, 2
        %s360 = sadd.s32 %s359, %s34
        %p361 = scmp.eq.s32.totalorder %s34, 0
        // Predicated region
        $region53: #{tpu_custom_call.1} parent=35 // pred_check
          %p362 = pneg %p361
        $region54: #{tpu_custom_call.1} parent=35 // pred_check_branch
          %364 = sbr.rel (%p362) target = $region56
        $region55: #{tpu_custom_call.1} parent=35 // pred_region
          %365 = vst [vmem:[%s349] sm:$0xff] 0.0
          %366 = vst [vmem:[%s349 + $0x8] sm:$0xff] 0.0
          %367 = vst [vmem:[%s356] sm:$0xff] 0.0
          %368 = vst [vmem:[%s356 + $0x8] sm:$0xff] 0.0
        $region56: #{tpu_custom_call.1} parent=35 // pred_fallthru
          _
        %v369 = vld [vmem:[%s302] sm:$0xff]
        %v370 = vld [vmem:[#allocation6] sm:$0xff]
        %v371 = vld [vmem:[#allocation6 + $0x8] sm:$0xff]
        %v372 = vld [vmem:[#allocation6 + $0x10] sm:$0xff]
        %v373 = vld [vmem:[#allocation6 + $0x18] sm:$0xff]
        %v374 = vld [vmem:[#allocation6 + $0x20] sm:$0xff]
        %v375 = vld [vmem:[#allocation6 + $0x28] sm:$0xff]
        %v376 = vld [vmem:[#allocation6 + $0x30] sm:$0xff]
        %v377 = vld [vmem:[#allocation6 + $0x38] sm:$0xff]
        %v378 = vld [vmem:[#allocation8] sm:$0x3]
        %v380 = vperm.slane %v378, 0
        %v381 = vperm.slane %v378, 1
        %vm384 = vcmask 261120
        %v386 = vsel %vm384, %v369, 0
        %388 = vmatpush.msra.mxu0 0.0
        %389 = vmatpush.msra.mxu0 0.0
        %390 = vmatpush.msra.mxu0 0.0
        %391 = vmatpush.msra.mxu0 0.0
        %392 = vmatpush.msra.mxu0 0.0
        %393 = vmatpush.msra.mxu0 0.0
        %394 = vmatpush.msra.mxu0 0.0
        %395 = vmatpush.msra.mxu0 0.0
        %396 = vmatpush.msra.mxu0 0.0
        %397 = vmatpush.msra.mxu0 0.0
        %398 = vmatpush.msra.mxu0 0.0
        %399 = vmatpush.msra.mxu0 0.0
        %400 = vmatpush.msra.mxu0 %v376
        %401 = vmatpush.msra.mxu0 %v374
        %402 = vmatpush.msra.mxu0 %v372
        %403 = vmatpush.msra.mxu0 %v370
        %404 = vmatmul.f32.gmra.mxu0 %v386
        %v405 = vpop.f32.mrf.mxu0
        %v406 = vadd.f32 %v380, %v405
        %407 = vdwg.mxu0
        %408 = vmatpush.msra.mxu0 0.0
        %409 = vmatpush.msra.mxu0 0.0
        %410 = vmatpush.msra.mxu0 0.0
        %411 = vmatpush.msra.mxu0 0.0
        %412 = vmatpush.msra.mxu0 0.0
        %413 = vmatpush.msra.mxu0 0.0
        %414 = vmatpush.msra.mxu0 0.0
        %415 = vmatpush.msra.mxu0 0.0
        %416 = vmatpush.msra.mxu0 0.0
        %417 = vmatpush.msra.mxu0 0.0
        %418 = vmatpush.msra.mxu0 0.0
        %419 = vmatpush.msra.mxu0 0.0
        %420 = vmatpush.msra.mxu0 %v377
        %421 = vmatpush.msra.mxu0 %v375
        %422 = vmatpush.msra.mxu0 %v373
        %423 = vmatpush.msra.mxu0 %v371
        %424 = vmatmul.f32.gmra.mxu0 %v386
        %v425 = vpop.f32.mrf.mxu0
        %v426 = vadd.f32 %v381, %v425
        %427 = vdwg.mxu0
        %s428 = smul.u32 %s33, 2
        %s429 = sadd.s32 %s428, %s34
        %s430 = smul.u32 %s429, 8
        %v431 = vlaneseq
        %v432 = vand.u32 %v431, 127
        %v433 = vstv %s430
        %v434 = vadd.s32 %v433, %v432
        %vm435 = vcmp.lt.s32.totalorder %v434, 18
        %v436 = vsel %vm435, 1, 0
        %v437 = vcvt.s32.f32 %v436
        %438 = vmax.xlane.f32.xlu0 %v406
        %v439 = vpop.xlane.xlu0 %438
        %vm440 = vcmp.eq.f32.partialorder %v406, %v439
        %v441 = vsel %vm440, %v432, 128
        %v442 = vand.u32 %v441, 65535
        %v443 = vshra.s32 %v441, 16
        %v444 = vcvt.s32.f32 %v442
        %v445 = vcvt.s32.f32 %v443
        %446 = vmin.xlane.f32.xlu0 %v445
        %v447 = vpop.xlane.xlu0 %446
        %vm448 = vcmp.eq.f32.partialorder %v445, %v447
        %v449 = vsel %vm448, %v444, inf
        %450 = vmin.xlane.f32.xlu0 %v449
        %v451 = vpop.xlane.xlu0 %450
        %v452 = vcvt.f32.s32 %v451
        %v453 = vcvt.f32.s32 %v447
        %v454 = vshll.u32 %v453, 16
        %v455 = vadd.s32 %v454, %v452
        %vm456 = vcmp.eq.s32.totalorder %v432, %v455
        %v457 = vsel %vm456, 1, 0
        %v458 = vcvt.s32.f32 %v457
        %459 = vst [vmem:[#allocation2] sm:$0xff] %v458
        %v460 = vsub.f32 %v406, %v439
        %v461 = vmul.f32 %v460, 1.442695
        %v462 = vpow.pop %v461
        %463 = vadd.xlane.f32.xlu0 %v462
        %v464 = vpop.xlane.xlu0 %463
        %v465 = vrcp.pop %v464
        %v466 = vmul.f32 %v464, %v465
        %v467 = vsub.f32 1.0, %v466
        %v468 = vmul.f32 %v465, %v467
        %v469 = vadd.f32 %v465, %v468
        %vm470 = vweird.f32 %v464
        %vm471 = vweird.f32 %v465
        %vm472 = vmor %vm470, %vm471
        %v473 = vsel %vm472, %v465, %v469
        %v474 = vand.u32 2147483647, %v464
        %vm475 = vcmp.eq.f32.partialorder %v474, 8.507059e+37
        %v476 = vand.u32 %v464, 2147483648
        %v477 = vor.u32 1.1754944e-38, %v476
        %v478 = vsel %vm475, %v477, %v473
        %v479 = vmul.f32 %v462, %v478
        %v480 = vld [vmem:[%s356] ss:$0 sm:$0xff]
        %vm481 = vcmask 64512
        %v483 = vsel %vm481, %v437, 0
        %485 = vmatpush.msra.mxu0 0.0
        %486 = vmatpush.msra.mxu0 0.0
        %487 = vmatpush.msra.mxu0 0.0
        %488 = vmatpush.msra.mxu0 0.0
        %489 = vmatpush.msra.mxu0 0.0
        %490 = vmatpush.msra.mxu0 0.0
        %491 = vmatpush.msra.mxu0 0.0
        %492 = vmatpush.msra.mxu0 0.0
        %493 = vmatpush.msra.mxu0 0.0
        %494 = vmatpush.msra.mxu0 0.0
        %495 = vmatpush.msra.mxu0 0.0
        %496 = vmatpush.msra.mxu0 0.0
        %497 = vmatpush.msra.mxu0 0.0
        %498 = vmatpush.msra.mxu0 0.0
        %499 = vmatpush.msra.mxu0 0.0
        %500 = vmatpush.msra.mxu0 %v479
        %501 = vmatmul.f32.gmra.mxu0 %v483
        %v502 = vpop.f32.mrf.mxu0
        %v503 = vadd.f32 0.0, %v502
        %504 = vdwg.mxu0
        %v505 = vadd.f32 %v480, %v503
        %506 = vst [vmem:[%s356] sm:$0x1] %v505
        %507 = vmax.xlane.f32.xlu0 %v426
        %v508 = vpop.xlane.xlu0 %507
        %vm509 = vcmp.eq.f32.partialorder %v426, %v508
        %v510 = vsel %vm509, %v432, 128
        %v511 = vand.u32 %v510, 65535
        %v512 = vshra.s32 %v510, 16
        %v513 = vcvt.s32.f32 %v511
        %v514 = vcvt.s32.f32 %v512
        %515 = vmin.xlane.f32.xlu0 %v514
        %v516 = vpop.xlane.xlu0 %515
        %vm517 = vcmp.eq.f32.partialorder %v514, %v516
        %v518 = vsel %vm517, %v513, inf
        %519 = vmin.xlane.f32.xlu0 %v518
        %v520 = vpop.xlane.xlu0 %519
        %v521 = vcvt.f32.s32 %v520
        %v522 = vcvt.f32.s32 %v516
        %v523 = vshll.u32 %v522, 16
        %v524 = vadd.s32 %v523, %v521
        %vm525 = vcmp.eq.s32.totalorder %v432, %v524
        %v526 = vsel %vm525, 1, 0
        %v527 = vcvt.s32.f32 %v526
        %528 = vst [vmem:[#allocation2 + $0x8] sm:$0xff] %v527
        %v529 = vsub.f32 %v426, %v508
        %v530 = vmul.f32 %v529, 1.442695
        %v531 = vpow.pop %v530
        %532 = vadd.xlane.f32.xlu0 %v531
        %v533 = vpop.xlane.xlu0 %532
        %v534 = vrcp.pop %v533
        %v535 = vmul.f32 %v533, %v534
        %v536 = vsub.f32 1.0, %v535
        %v537 = vmul.f32 %v534, %v536
        %v538 = vadd.f32 %v534, %v537
        %vm539 = vweird.f32 %v533
        %vm540 = vweird.f32 %v534
        %vm541 = vmor %vm539, %vm540
        %v542 = vsel %vm541, %v534, %v538
        %v543 = vand.u32 2147483647, %v533
        %vm544 = vcmp.eq.f32.partialorder %v543, 8.507059e+37
        %v545 = vand.u32 %v533, 2147483648
        %v546 = vor.u32 1.1754944e-38, %v545
        %v547 = vsel %vm544, %v546, %v542
        %v548 = vmul.f32 %v531, %v547
        %v549 = vld [vmem:[%s356 + $0x8] ss:$0 sm:$0xff]
        %550 = vmatpush.msra.mxu0 0.0
        %551 = vmatpush.msra.mxu0 0.0
        %552 = vmatpush.msra.mxu0 0.0
        %553 = vmatpush.msra.mxu0 0.0
        %554 = vmatpush.msra.mxu0 0.0
        %555 = vmatpush.msra.mxu0 0.0
        %556 = vmatpush.msra.mxu0 0.0
        %557 = vmatpush.msra.mxu0 0.0
        %558 = vmatpush.msra.mxu0 0.0
        %559 = vmatpush.msra.mxu0 0.0
        %560 = vmatpush.msra.mxu0 0.0
        %561 = vmatpush.msra.mxu0 0.0
        %562 = vmatpush.msra.mxu0 0.0
        %563 = vmatpush.msra.mxu0 0.0
        %564 = vmatpush.msra.mxu0 0.0
        %565 = vmatpush.msra.mxu0 %v548
        %566 = vmatmul.f32.gmra.mxu0 %v483
        %v567 = vpop.f32.mrf.mxu0
        %v568 = vadd.f32 0.0, %v567
        %569 = vdwg.mxu0
        %v570 = vadd.f32 %v549, %v568
        %571 = vst [vmem:[%s356 + $0x8] sm:$0x1] %v570
        %v572 = vld [vmem:[%s349] ss:$8 sm:$0x3]
        %v573 = vld [vmem:[#allocation2] sm:$0xff]
        %v574 = vld [vmem:[#allocation2 + $0x8] sm:$0xff]
        %575 = vmatpush.msra.mxu0 0.0
        %576 = vmatpush.msra.mxu0 0.0
        %577 = vmatpush.msra.mxu0 0.0
        %578 = vmatpush.msra.mxu0 0.0
        %579 = vmatpush.msra.mxu0 0.0
        %580 = vmatpush.msra.mxu0 0.0
        %581 = vmatpush.msra.mxu0 0.0
        %582 = vmatpush.msra.mxu0 0.0
        %583 = vmatpush.msra.mxu0 0.0
        %584 = vmatpush.msra.mxu0 0.0
        %585 = vmatpush.msra.mxu0 0.0
        %586 = vmatpush.msra.mxu0 0.0
        %587 = vmatpush.msra.mxu0 0.0
        %588 = vmatpush.msra.mxu0 0.0
        %589 = vmatpush.msra.mxu0 0.0
        %590 = vmatpush.msra.mxu0 %v573
        %591 = vmatmul.f32.gmra.mxu0 %v483
        %v592 = vpop.f32.mrf.mxu0
        %v593 = vadd.f32 0.0, %v592
        %594 = vdwg.mxu0
        %595 = vmatpush.msra.mxu0 0.0
        %596 = vmatpush.msra.mxu0 0.0
        %597 = vmatpush.msra.mxu0 0.0
        %598 = vmatpush.msra.mxu0 0.0
        %599 = vmatpush.msra.mxu0 0.0
        %600 = vmatpush.msra.mxu0 0.0
        %601 = vmatpush.msra.mxu0 0.0
        %602 = vmatpush.msra.mxu0 0.0
        %603 = vmatpush.msra.mxu0 0.0
        %604 = vmatpush.msra.mxu0 0.0
        %605 = vmatpush.msra.mxu0 0.0
        %606 = vmatpush.msra.mxu0 0.0
        %607 = vmatpush.msra.mxu0 0.0
        %608 = vmatpush.msra.mxu0 0.0
        %609 = vmatpush.msra.mxu0 0.0
        %610 = vmatpush.msra.mxu0 %v574
        %611 = vmatmul.f32.gmra.mxu0 %v483
        %v612 = vpop.f32.mrf.mxu0
        %v613 = vadd.f32 0.0, %v612
        %614 = vdwg.mxu0
        %v617 = vrot.slane %v613, 7
        %vm618 = vcmask 1040384
        %v619 = vsel %vm618, %v593, %v617
        %v621 = vadd.f32 %v572, %v619
        %v622 = vlaneseq
        %vm623 = vcmp.ge.s32.totalorder %v622, 0
        %vm624 = vcmp.lt.s32.totalorder %v622, 256
        %vm625 = vmand %vm623, %vm624
        %626 = vst.msk [vmem:[%s349] ss:$8 sm:$0x3] %vm625, %v621
        %627 = vst.msk [vmem:[%s349] ss:$8 sm:$0x0] %vm625, %v621
        %v628 = vld [vmem:[#allocation2] sm:$0xff]
        %v629 = vld [vmem:[#allocation2 + $0x8] sm:$0xff]
        %v630 = vld [vmem:[#allocation9] sm:$0xff]
        %v631 = vld [vmem:[#allocation9 + $0x8] sm:$0xff]
        %v632 = vld [vmem:[#allocation9 + $0x10] sm:$0xff]
        %v633 = vld [vmem:[#allocation9 + $0x18] sm:$0xff]
        %v634 = vld [vmem:[#allocation9 + $0x20] sm:$0xff]
        %v635 = vld [vmem:[#allocation9 + $0x28] sm:$0xff]
        %v636 = vld [vmem:[#allocation9 + $0x30] sm:$0xff]
        %v637 = vld [vmem:[#allocation9 + $0x38] sm:$0xff]
        %v638 = vld [vmem:[#allocation9 + $0x40] sm:$0xff]
        %v639 = vld [vmem:[#allocation9 + $0x48] sm:$0xff]
        %v640 = vld [vmem:[#allocation9 + $0x50] sm:$0xff]
        %v641 = vld [vmem:[#allocation9 + $0x58] sm:$0xff]
        %v642 = vld [vmem:[#allocation9 + $0x60] sm:$0xff]
        %v643 = vld [vmem:[#allocation9 + $0x68] sm:$0xff]
        %v644 = vld [vmem:[#allocation9 + $0x70] sm:$0xff]
        %v645 = vld [vmem:[#allocation9 + $0x78] sm:$0xff]
        %v646 = vld [vmem:[#allocation9 + $0x80] sm:$0xff]
        %v647 = vld [vmem:[#allocation9 + $0x88] sm:$0xff]
        %v648 = vld [vmem:[#allocation9 + $0x90] sm:$0xff]
        %v649 = vld [vmem:[#allocation9 + $0x98] sm:$0xff]
        %v650 = vld [vmem:[#allocation9 + $0xa0] sm:$0xff]
        %v651 = vld [vmem:[#allocation9 + $0xa8] sm:$0xff]
        %v652 = vld [vmem:[#allocation9 + $0xb0] sm:$0xff]
        %v653 = vld [vmem:[#allocation9 + $0xb8] sm:$0xff]
        %v654 = vld [vmem:[#allocation9 + $0xc0] sm:$0xff]
        %v655 = vld [vmem:[#allocation9 + $0xc8] sm:$0xff]
        %v656 = vld [vmem:[#allocation9 + $0xd0] sm:$0xff]
        %v657 = vld [vmem:[#allocation9 + $0xd8] sm:$0xff]
        %v658 = vld [vmem:[#allocation9 + $0xe0] sm:$0xff]
        %v659 = vld [vmem:[#allocation9 + $0xe8] sm:$0xff]
        %v660 = vld [vmem:[#allocation9 + $0xf0] sm:$0xff]
        %v661 = vld [vmem:[#allocation9 + $0xf8] sm:$0xff]
        %662 = vmatpush.msra.mxu0 %v645
        %663 = vmatpush.msra.mxu0 %v644
        %664 = vmatpush.msra.mxu0 %v643
        %665 = vmatpush.msra.mxu0 %v642
        %666 = vmatpush.msra.mxu0 %v641
        %667 = vmatpush.msra.mxu0 %v640
        %668 = vmatpush.msra.mxu0 %v639
        %669 = vmatpush.msra.mxu0 %v638
        %670 = vmatpush.msra.mxu0 %v637
        %671 = vmatpush.msra.mxu0 %v636
        %672 = vmatpush.msra.mxu0 %v635
        %673 = vmatpush.msra.mxu0 %v634
        %674 = vmatpush.msra.mxu0 %v633
        %675 = vmatpush.msra.mxu0 %v632
        %676 = vmatpush.msra.mxu0 %v631
        %677 = vmatpush.msra.mxu0 %v630
        %678 = vmatmul.f32.gmra.mxu0 %v628
        %v679 = vpop.f32.mrf.mxu0
        %v680 = vadd.f32 0.0, %v679
        %681 = vdwg.mxu0
        %682 = vmatpush.msra.mxu0 %v661
        %683 = vmatpush.msra.mxu0 %v660
        %684 = vmatpush.msra.mxu0 %v659
        %685 = vmatpush.msra.mxu0 %v658
        %686 = vmatpush.msra.mxu0 %v657
        %687 = vmatpush.msra.mxu0 %v656
        %688 = vmatpush.msra.mxu0 %v655
        %689 = vmatpush.msra.mxu0 %v654
        %690 = vmatpush.msra.mxu0 %v653
        %691 = vmatpush.msra.mxu0 %v652
        %692 = vmatpush.msra.mxu0 %v651
        %693 = vmatpush.msra.mxu0 %v650
        %694 = vmatpush.msra.mxu0 %v649
        %695 = vmatpush.msra.mxu0 %v648
        %696 = vmatpush.msra.mxu0 %v647
        %697 = vmatpush.msra.mxu0 %v646
        %698 = vmatmul.f32.gmra.mxu0 %v629
        %v699 = vpop.f32.mrf.mxu0
        %v700 = vadd.f32 %v680, %v699
        %701 = vdwg.mxu0
        %702 = vst [vmem:[%s342] sm:$0xff] %v700
        %s703 = sand.u32 %s146, 1
        %s704 = scalar_lea.sflag [#allocation5], %s703
        %s705 = sand.u32 %s146, 1
        %s706 = smul.addr %s705, 8
        %s707 = scalar_lea.vmem [#allocation11], %s706
        %s708 = sand.u32 %s29, 1
        %s709 = scalar_lea.sflag [#allocation13], %s708
        %s710 = sand.u32 %s172, 1
        %s711 = smul.addr %s710, 16
        %s712 = scalar_lea.vmem [#allocation12], %s711
        %s713 = sand.u32 %s29, 1
        %s714 = scalar_lea.sflag [#allocation13], %s713
        %s715 = sand.u32 %s198, 1
        %s716 = smul.addr %s715, 16
        %s717 = scalar_lea.vmem [#allocation14], %s716
        // Predicated region
        $region57: #{tpu_custom_call.1} parent=35 // pred_check
          %p718 = pneg %p156
        $region58: #{tpu_custom_call.1} parent=35 // pred_check_branch
          %720 = sbr.rel (%p718) target = $region60
        $region59: #{tpu_custom_call.1} parent=35 // pred_region
          %s721 = smul.u32 %s33, 2
          %s722 = sadd.s32 %s721, %s34
          %724 = vsyncadd %s704, 0
          %s725 = smul.addr %s722, 8
          %s726 = scalar_lea.hbm %s4, %s725
          %s728 = sshll.u32 %s707, 4
          %s729 = int_to_ptr.vmem [resolvable:$true] %s728
          %s730 = sshll.u32 %s726, 4
          %s731 = int_to_ptr.hbm [resolvable:$true] %s730
          %733 = dma.vmem_to_hbm [thread:$0]  %s729, 128, %s731, %s704
        $region60: #{tpu_custom_call.1} parent=35 // pred_fallthru
          _
        // Predicated region
        $region61: #{tpu_custom_call.1} parent=35 // pred_check
          %p734 = pneg %p182
        $region62: #{tpu_custom_call.1} parent=35 // pred_check_branch
          %736 = sbr.rel (%p734) target = $region64
        $region63: #{tpu_custom_call.1} parent=35 // pred_region
          %738 = vsyncadd %s709, 0
          %s739 = smul.addr %s33, 2
          %s740 = smul.addr %s739, 8
          %s741 = scalar_lea.hbm %s5, %s740
          %s743 = sshll.u32 %s712, 4
          %s744 = int_to_ptr.vmem [resolvable:$true] %s743
          %s745 = sshll.u32 %s741, 4
          %s746 = int_to_ptr.hbm [resolvable:$true] %s745
          %748 = dma.vmem_to_hbm [thread:$0]  %s744, 256, %s746, %s709
        $region64: #{tpu_custom_call.1} parent=35 // pred_fallthru
          _
        // Predicated region
        $region65: #{tpu_custom_call.1} parent=35 // pred_check
          %p749 = pneg %p208
        $region66: #{tpu_custom_call.1} parent=35 // pred_check_branch
          %751 = sbr.rel (%p749) target = $region68
        $region67: #{tpu_custom_call.1} parent=35 // pred_region
          %753 = vsyncadd %s714, 0
          %s754 = smul.addr %s33, 2
          %s755 = smul.addr %s754, 8
          %s756 = scalar_lea.hbm %s6, %s755
          %s758 = sshll.u32 %s717, 4
          %s759 = int_to_ptr.vmem [resolvable:$true] %s758
          %s760 = sshll.u32 %s756, 4
          %s761 = int_to_ptr.hbm [resolvable:$true] %s760
          %763 = dma.vmem_to_hbm [thread:$0]  %s759, 256, %s761, %s714
        $region68: #{tpu_custom_call.1} parent=35 // pred_fallthru
          _
      $region36: #{tpu_custom_call.1} parent=5 // pred_fallthru
        _
      %p764 = scmp.le.s32.totalorder 2, %s24
      // Predicated region
      $region69: #{tpu_custom_call.1} parent=5 // pred_check
        %p765 = pneg %p764
      $region70: #{tpu_custom_call.1} parent=5 // pred_check_branch
        %767 = sbr.rel (%p765) target = $region72
      $region71: #{tpu_custom_call.1} parent=5 // pred_region
        %s768 = ssub.s32 %s24, 2
        // Predicated region
        $region73: #{tpu_custom_call.1} parent=71 // pred_check
          %p769 = pneg %p162
        $region74: #{tpu_custom_call.1} parent=71 // pred_check_branch
          %771 = sbr.rel (%p769) target = $region76
        $region75: #{tpu_custom_call.1} parent=71 // pred_region
          %s772 = sand.u32 %s147, 1
          %s773 = scalar_lea.sflag [#allocation5], %s772
          %s774 = sand.u32 %s147, 1
          %s775 = smul.addr %s774, 8
          %s776 = scalar_lea.vmem [#allocation11], %s775
          %778 = dma.done %s773, 128
        $region76: #{tpu_custom_call.1} parent=71 // pred_fallthru
          _
        // Predicated region
        $region77: #{tpu_custom_call.1} parent=71 // pred_check
          %p779 = pneg %p188
        $region78: #{tpu_custom_call.1} parent=71 // pred_check_branch
          %781 = sbr.rel (%p779) target = $region80
        $region79: #{tpu_custom_call.1} parent=71 // pred_region
          %s782 = sand.u32 %s30, 1
          %s783 = scalar_lea.sflag [#allocation13], %s782
          %s784 = sand.u32 %s173, 1
          %s785 = smul.addr %s784, 16
          %s786 = scalar_lea.vmem [#allocation12], %s785
          %788 = dma.done %s783, 256
        $region80: #{tpu_custom_call.1} parent=71 // pred_fallthru
          _
        // Predicated region
        $region81: #{tpu_custom_call.1} parent=71 // pred_check
          %p789 = pneg %p214
        $region82: #{tpu_custom_call.1} parent=71 // pred_check_branch
          %791 = sbr.rel (%p789) target = $region84
        $region83: #{tpu_custom_call.1} parent=71 // pred_region
          %s792 = sand.u32 %s30, 1
          %s793 = scalar_lea.sflag [#allocation13], %s792
          %s794 = sand.u32 %s199, 1
          %s795 = smul.addr %s794, 16
          %s796 = scalar_lea.vmem [#allocation14], %s795
          %798 = dma.done %s793, 256
        $region84: #{tpu_custom_call.1} parent=71 // pred_fallthru
          _
      $region72: #{tpu_custom_call.1} parent=5 // pred_fallthru
        _
    $region6: #{tpu_custom_call.1} parent=1 // loop_footer
      %s28 = sadd.s32 1, %s24
    $region7: #{tpu_custom_call.1} parent=1 // loop_footer_branch
      %23 = sbr.rel target = $region3
    $region8: #{tpu_custom_call.1} parent=1 // loop_exit
      _
    %799 = vsyncpa [#allocation4], 1
    %s800 = scalar_lea.sflag [#allocation4], 1
    %801 = vsyncpa %s800, 1
    %802 = vsyncpa [#allocation7], 1
    %803 = vsyncpa [#allocation10], 1
    %804 = vsyncpa [#allocation5], 1
    %s805 = scalar_lea.sflag [#allocation5], 1
    %806 = vsyncpa %s805, 1
    %807 = vsyncpa [#allocation13], 1
    %s808 = scalar_lea.sflag [#allocation13], 1
    %809 = vsyncpa %s808, 1

</llo_original>
